<compile_context>
chip_gen: v7x
topology: tpu7x:2x2x1
jax: 0.10.0
libtpu: 0.0.40
codegen_flags: <defaults>
</compile_context>

<pallas_src>
import functools

import jax
import jax.numpy as jnp
from jax import lax
from jax.experimental import pallas as pl
from jax.experimental.pallas import tpu as pltpu

# ----- deterministic "configer" values (module __init__) -------------------
OHEM_THRESH = 0.7                  # configer.get('loss', 'params')['ohem_thresh']
CE_REDUCTION = "elementwise_mean"  # default reduction


def _round_up(x, m):
    return (x + m - 1) // m * m


def _cdiv(a, b):
    return (a + b - 1) // b


# ---------------------------------------------------------------------------
# Kernel: per-pixel softmax prob at the target class + weighted per-pixel CE
# ---------------------------------------------------------------------------
def _softmax_ce_kernel(ignore_index, logits_ref, labels_ref, weight_ref,
                       prob_ref, loss_ref):
    # Upcast in-register: softmax/logsumexp always computed in f32 (required
    # for bf16 inputs; v5e has no bf16 VPU/EUP anyway).
    x = logits_ref[...].astype(jnp.float32)        # [C, T]
    lab = labels_ref[...]                          # [1, T] i32
    w = weight_ref[...].astype(jnp.float32)        # [C, 1]

    valid = lab != ignore_index                    # [1, T]
    tgt = jnp.where(valid, lab, 0)                 # tmp_target[== ignore] = 0

    # numerically stable log-softmax over the class (sublane) axis
    m = jnp.max(x, axis=0, keepdims=True)                      # [1, T]
    e = jnp.exp(x - m)
    lse = m + jnp.log(jnp.sum(e, axis=0, keepdims=True))       # logsumexp [1, T]

    # target-class gather via a single select over C sublanes (one compare,
    # reused for both the logit gather and the class-weight gather)
    sel = lax.broadcasted_iota(jnp.int32, x.shape, 0) == tgt    # [C, T]
    tgt_logit = jnp.sum(jnp.where(sel, x, 0.0), axis=0, keepdims=True)   # [1, T]
    w_tgt = jnp.sum(jnp.where(sel, w, 0.0), axis=0, keepdims=True)       # [1, T]

    ce = (lse - tgt_logit) * w_tgt       # weight[target] * -log softmax[target]
    prob = jnp.exp(tgt_logit - lse)      # softmax(x)[target]

    # invalid pixels: prob -> +inf (never selected, sorts last), loss -> 0
    prob_ref[...] = jnp.where(valid, prob, jnp.inf)
    loss_ref[...] = jnp.where(valid, ce, 0.0)


def softmax_ce_probs(predict, target, weight_vec, ignore_index=-1,
                     target_bytes=8 << 20):
    """Returns (prob_at_target, weighted_ce_loss) flattened to [N*H*W]."""
    n, c, h, w = predict.shape
    hw = h * w
    logits = predict.reshape(n, c, hw)                    # native dtype, no cast
    labels = target.reshape(n, 1, hw).astype(jnp.int32)
    weight = weight_vec.reshape(c, 1).astype(jnp.float32)

    in_bytes = jnp.dtype(predict.dtype).itemsize

    # Lane-dense 128-multiple tile holding ~target_bytes of logits. The grid
    # uses cdiv, so tile need not divide hw (edge-block output writes are
    # masked; garbage reads in the pad region never reach the outputs).
    tile = max(128, (target_bytes // (in_bytes * c)) // 128 * 128)
    tile = min(tile, _round_up(hw, 128))
    # keep >=2 grid blocks so v7x's second TensorCore gets work
    if n * _cdiv(hw, tile) < 2 and hw > 128:
        tile = max(128, _round_up(_cdiv(hw, 2), 128))
    grid = (n, _cdiv(hw, tile))

    # explicit scoped-VMEM budget: double-buffered blocks + slack
    per_block = tile * (c * in_bytes + 4 + 2 * 4) + c * 4
    vmem_limit = int(min(48 << 20, max(32 << 20, 2 * per_block + (4 << 20))))

    kernel = functools.partial(_softmax_ce_kernel, ignore_index)
    prob, loss = pl.pallas_call(
        kernel,
        grid=grid,
        in_specs=[pl.BlockSpec((None, c, tile), lambda i, j: (i, 0, j)),
                  pl.BlockSpec((None, 1, tile), lambda i, j: (i, 0, j)),
                  pl.BlockSpec((c, 1), lambda i, j: (0, 0))],
        out_specs=[pl.BlockSpec((None, 1, tile), lambda i, j: (i, 0, j)),
                   pl.BlockSpec((None, 1, tile), lambda i, j: (i, 0, j))],
        out_shape=[jax.ShapeDtypeStruct((n, 1, hw), jnp.float32),
                   jax.ShapeDtypeStruct((n, 1, hw), jnp.float32)],
        compiler_params=pltpu.CompilerParams(
            dimension_semantics=("parallel", "parallel"),
            vmem_limit_bytes=vmem_limit),
    )(logits, labels, weight)
    return prob.reshape(-1), loss.reshape(-1)


# ---------------------------------------------------------------------------
# Plain-JAX glue: OHEM threshold selection + masked reduction
# ---------------------------------------------------------------------------
def weighted_fs_ohem_ce_loss(predict, target, min_kept=1, weight=None,
                             ignore_index=-1, thresh=OHEM_THRESH,
                             reduction=CE_REDUCTION):
    n, c, h, w = predict.shape
    if weight is None:
        weight_vec = jnp.ones((c,), jnp.float32)
    else:
        weight_vec = jnp.asarray(weight, dtype=jnp.float32)

    prob_flat, loss_flat = softmax_ce_probs(predict, target, weight_vec,
                                            ignore_index)

    target_flat = target.reshape(-1).astype(jnp.int32)
    valid = target_flat != ignore_index
    n_valid = jnp.sum(valid.astype(jnp.int32))

    # k = min(min_kept, n_valid - 1), clamped for the n_valid == 0 edge case
    # (torch would raise on the empty sort there; we return 0/0 = NaN mean).
    k_dyn = jnp.maximum(jnp.minimum(jnp.int32(min_kept), n_valid - 1), 0)

    thresh_f = jnp.float32(thresh)

    # threshold == thresh  <=>  sort_prob[k] <= thresh  <=>  at least k+1 valid
    # probs are <= thresh.  Invalid pixels carry prob = +inf, so a plain count
    # over the full array is exact.  Only in the rare "not enough confident
    # pixels" case do we pay for a top_k (gated behind lax.cond).
    count_le = jnp.sum((prob_flat <= thresh_f).astype(jnp.int32))

    total = prob_flat.shape[0]
    kk = int(min(min_kept + 1, total))        # static top-k width

    def _rare_topk_threshold():
        # (k+1)-th smallest valid prob; +inf invalids sort to the end.
        smallest = -lax.top_k(-prob_flat, kk)[0]          # ascending probs
        min_threshold = smallest[jnp.minimum(k_dyn, kk - 1)]
        return jnp.maximum(min_threshold, thresh_f)

    threshold = lax.cond(count_le > k_dyn,
                         lambda: thresh_f,
                         _rare_topk_threshold)

    select = valid & (prob_flat < threshold)
    sel_f = select.astype(jnp.float32)
    loss_sum = jnp.sum(loss_flat * sel_f)

    if reduction == "sum":
        return loss_sum
    elif reduction == "elementwise_mean":
        # torch .mean() of an empty selection is NaN; 0/0 here matches.
        return loss_sum / jnp.sum(sel_f)
    else:
        raise NotImplementedError("Reduction Error!")


# ---------------------------------------------------------------------------
if __name__ == "__main__":
    key = jax.random.PRNGKey(0)
    k1, k2, k3 = jax.random.split(key, 3)

    N, C, H, W = 2, 4, 16, 16
    predict = jax.random.normal(k1, (N, C, H, W), dtype=jnp.float32)
    target = jax.random.randint(k2, (N, H, W), 0, C, dtype=jnp.int32)
    ignore = jax.random.bernoulli(k3, 0.1, (N, H, W))
    target = jnp.where(ignore, -1, target)   # some ignore_index pixels

    loss = jax.jit(weighted_fs_ohem_ce_loss)(predict, target)
    jax.block_until_ready(loss)

    # exercise the fused class-weight path as well
    cls_w = jnp.array([1.0, 2.0, 0.5, 1.5], dtype=jnp.float32)
    loss_w = jax.jit(
        functools.partial(weighted_fs_ohem_ce_loss, weight=cls_w)
    )(predict, target)
    jax.block_until_ready(loss_w)

    print("KERNEL_OK")
</pallas_src>

<mosaic_0001>
module attributes {stable_mosaic.version = 11 : i64} {
  func.func @_softmax_ce_kernel(%arg0: i32, %arg1: i32, %arg2: memref<1x4x256xf32, #tpu.memory_space<vmem>>, %arg3: memref<1x1x256xi32, #tpu.memory_space<vmem>>, %arg4: memref<4x1xf32, #tpu.memory_space<vmem>>, %arg5: memref<1x1x256xf32, #tpu.memory_space<vmem>>, %arg6: memref<1x1x256xf32, #tpu.memory_space<vmem>>) attributes {dimension_semantics = [#tpu.dimension_semantics<parallel>, #tpu.dimension_semantics<parallel>], iteration_bounds = array<i64: 2, 1>, scalar_prefetch = 0 : i64, scratch_operands = 0 : i64, tpu.core_type = #tpu.core_type<tc>, window_params = [{transform_indices = @transform_0, window_bounds = array<i64: 1, 4, 256>}, {transform_indices = @transform_1, window_bounds = array<i64: 1, 1, 256>}, {pipeline_mode = #tpu.pipeline_mode<synchronous>, transform_indices = @transform_2, window_bounds = array<i64: 4, 1>}, {transform_indices = @transform_3, window_bounds = array<i64: 1, 1, 256>}, {transform_indices = @transform_4, window_bounds = array<i64: 1, 1, 256>}]} {
    %c0 = arith.constant 0 : index
    %c0_0 = arith.constant 0 : index
    %c0_1 = arith.constant 0 : index
    %0 = vector.load %arg2[%c0, %c0_0, %c0_1] : memref<1x4x256xf32, #tpu.memory_space<vmem>>, vector<1x4x256xf32>
    %1 = vector.shape_cast %0 : vector<1x4x256xf32> to vector<4x256xf32>
    %c0_2 = arith.constant 0 : index
    %c0_3 = arith.constant 0 : index
    %c0_4 = arith.constant 0 : index
    %2 = vector.load %arg3[%c0_2, %c0_3, %c0_4] : memref<1x1x256xi32, #tpu.memory_space<vmem>>, vector<1x1x256xi32>
    %3 = vector.shape_cast %2 : vector<1x1x256xi32> to vector<1x256xi32>
    %c0_5 = arith.constant 0 : index
    %c0_6 = arith.constant 0 : index
    %4 = vector.load %arg4[%c0_5, %c0_6] : memref<4x1xf32, #tpu.memory_space<vmem>>, vector<4x1xf32>
    %c-1_i32 = arith.constant -1 : i32
    %5 = vector.broadcast %c-1_i32 : i32 to vector<1x256xi32>
    %6 = arith.cmpi ne, %3, %5 : vector<1x256xi32>
    %c0_i32 = arith.constant 0 : i32
    %7 = vector.broadcast %c0_i32 : i32 to vector<1x256xi32>
    %8 = arith.select %6, %3, %7 : vector<1x256xi1>, vector<1x256xi32>
    %cst = arith.constant dense<0xFF800000> : vector<256xf32>
    %9 = vector.multi_reduction <maximumf>, %1, %cst [0] : vector<4x256xf32> to vector<256xf32>
    %10 = vector.shape_cast %9 : vector<256xf32> to vector<1x256xf32>
    %11 = vector.broadcast %10 : vector<1x256xf32> to vector<4x256xf32>
    %12 = arith.subf %1, %11 : vector<4x256xf32>
    %13 = math.exp %12 : vector<4x256xf32>
    %cst_7 = arith.constant dense<0.000000e+00> : vector<256xf32>
    %14 = vector.multi_reduction <add>, %13, %cst_7 [0] : vector<4x256xf32> to vector<256xf32>
    %15 = vector.shape_cast %14 : vector<256xf32> to vector<1x256xf32>
    %16 = math.log %15 : vector<1x256xf32>
    %17 = arith.addf %10, %16 : vector<1x256xf32>
    %18 = tpu.iota {dimensions = array<i32: 0>} : vector<4x256xi32>
    %19 = vector.broadcast %8 : vector<1x256xi32> to vector<4x256xi32>
    %20 = arith.cmpi eq, %18, %19 : vector<4x256xi32>
    %cst_8 = arith.constant 0.000000e+00 : f32
    %21 = vector.broadcast %cst_8 : f32 to vector<4x256xf32>
    %22 = arith.select %20, %1, %21 : vector<4x256xi1>, vector<4x256xf32>
    %cst_9 = arith.constant dense<0.000000e+00> : vector<256xf32>
    %23 = vector.multi_reduction <add>, %22, %cst_9 [0] : vector<4x256xf32> to vector<256xf32>
    %24 = vector.shape_cast %23 : vector<256xf32> to vector<1x256xf32>
    %cst_10 = arith.constant 0.000000e+00 : f32
    %25 = vector.shape_cast %4 : vector<4x1xf32> to vector<4x1xf32>
    %26 = vector.broadcast %25 : vector<4x1xf32> to vector<4x256xf32>
    %27 = vector.broadcast %cst_10 : f32 to vector<4x256xf32>
    %28 = arith.select %20, %26, %27 : vector<4x256xi1>, vector<4x256xf32>
    %cst_11 = arith.constant dense<0.000000e+00> : vector<256xf32>
    %29 = vector.multi_reduction <add>, %28, %cst_11 [0] : vector<4x256xf32> to vector<256xf32>
    %30 = vector.shape_cast %29 : vector<256xf32> to vector<1x256xf32>
    %31 = arith.subf %17, %24 : vector<1x256xf32>
    %32 = arith.mulf %31, %30 : vector<1x256xf32>
    %33 = arith.subf %24, %17 : vector<1x256xf32>
    %34 = math.exp %33 : vector<1x256xf32>
    %cst_12 = arith.constant 0x7F800000 : f32
    %35 = vector.broadcast %cst_12 : f32 to vector<1x256xf32>
    %36 = arith.select %6, %34, %35 : vector<1x256xi1>, vector<1x256xf32>
    %c0_13 = arith.constant 0 : index
    %c0_14 = arith.constant 0 : index
    %c0_15 = arith.constant 0 : index
    %37 = vector.load %arg5[%c0_13, %c0_14, %c0_15] : memref<1x1x256xf32, #tpu.memory_space<vmem>>, vector<1x1x256xf32>
    %38 = vector.shape_cast %37 : vector<1x1x256xf32> to vector<1x256xf32>
    %39 = vector.shape_cast %36 : vector<1x256xf32> to vector<1x1x256xf32>
    tpu.vector_store %arg5[%c0_13, %c0_14, %c0_15], %39 {strides = array<i32>} : memref<1x1x256xf32, #tpu.memory_space<vmem>>, vector<1x1x256xf32>,
    %cst_16 = arith.constant 0.000000e+00 : f32
    %40 = vector.broadcast %cst_16 : f32 to vector<1x256xf32>
    %41 = arith.select %6, %32, %40 : vector<1x256xi1>, vector<1x256xf32>
    %c0_17 = arith.constant 0 : index
    %c0_18 = arith.constant 0 : index
    %c0_19 = arith.constant 0 : index
    %42 = vector.load %arg6[%c0_17, %c0_18, %c0_19] : memref<1x1x256xf32, #tpu.memory_space<vmem>>, vector<1x1x256xf32>
    %43 = vector.shape_cast %42 : vector<1x1x256xf32> to vector<1x256xf32>
    %44 = vector.shape_cast %41 : vector<1x256xf32> to vector<1x1x256xf32>
    tpu.vector_store %arg6[%c0_17, %c0_18, %c0_19], %44 {strides = array<i32>} : memref<1x1x256xf32, #tpu.memory_space<vmem>>, vector<1x1x256xf32>,
    return
  }
  func.func @transform_0(%arg0: i32, %arg1: i32) -> (i32, i32, i32) {
    %c0_i32 = arith.constant 0 : i32
    %c0_i32_0 = arith.constant 0 : i32
    return %arg0, %c0_i32, %arg1 : i32, i32, i32
  }
  func.func @transform_1(%arg0: i32, %arg1: i32) -> (i32, i32, i32) {
    %c0_i32 = arith.constant 0 : i32
    %c0_i32_0 = arith.constant 0 : i32
    return %arg0, %c0_i32, %arg1 : i32, i32, i32
  }
  func.func @transform_2(%arg0: i32, %arg1: i32) -> (i32, i32) {
    %c0_i32 = arith.constant 0 : i32
    %c0_i32_0 = arith.constant 0 : i32
    %c0_i32_1 = arith.constant 0 : i32
    return %c0_i32, %c0_i32_0 : i32, i32
  }
  func.func @transform_3(%arg0: i32, %arg1: i32) -> (i32, i32, i32) {
    %c0_i32 = arith.constant 0 : i32
    %c0_i32_0 = arith.constant 0 : i32
    return %arg0, %c0_i32, %arg1 : i32, i32, i32
  }
  func.func @transform_4(%arg0: i32, %arg1: i32) -> (i32, i32, i32) {
    %c0_i32 = arith.constant 0 : i32
    %c0_i32_0 = arith.constant 0 : i32
    return %arg0, %c0_i32, %arg1 : i32, i32, i32
  }
}

</mosaic_0001>

<llo_original>
// kernel: neg.0
$region0: #{neg.0}
  #allocation0 [shape = 's32[1]{0}', space=sflag, size = 0x4, scoped, tag = 'scoped memory for neg.0']
  %s0 = inlined_call_operand.vmem [shape: f32[2,1,256], index: 0, kind: input, shape index: {}]
  %s1 = inlined_call_operand.vmem [shape: f32[2,1,256], index: 1, kind: output, shape index: {}]
  %v2 = vld [vmem:[%s0] sm:$0x1]
  %3 = xla_tuple %v2
  %4 = xla_tuple %3
  %v5 = vxor.u32 %v2, 2147483648
  %6 = xla_tuple %v5
  %7 = vst [vmem:[%s1] sm:$0x1] %v5
  %s8 = scalar_lea.vmem %s0, 2
  %v9 = vld [vmem:[%s8] sm:$0x1]
  %10 = xla_tuple %v9
  %11 = xla_tuple %10
  %v12 = vxor.u32 %v9, 2147483648
  %13 = xla_tuple %v12
  %s14 = scalar_lea.vmem %s1, 2
  %15 = vst [vmem:[%s14] sm:$0x1] %v12
  %s16 = scalar_lea.vmem %s0, 1
  %v17 = vld [vmem:[%s16] sm:$0x1]
  %18 = xla_tuple %v17
  %19 = xla_tuple %18
  %v20 = vxor.u32 %v17, 2147483648
  %21 = xla_tuple %v20
  %s22 = scalar_lea.vmem %s1, 1
  %23 = vst [vmem:[%s22] sm:$0x1] %v20
  %s24 = scalar_lea.vmem %s0, 3
  %v25 = vld [vmem:[%s24] sm:$0x1]
  %26 = xla_tuple %v25
  %27 = xla_tuple %26
  %v28 = vxor.u32 %v25, 2147483648
  %29 = xla_tuple %v28
  %s30 = scalar_lea.vmem %s1, 3
  %31 = vst [vmem:[%s30] sm:$0x1] %v28

// kernel: weighted_fs_ohem_ce_loss.1
$region0: #{weighted_fs_ohem_ce_loss.1}
  #allocation0 [shape = 'u32[]', space=smem, size = 0x4, offset = 0x4, fixed_abs, tag = 'smem constant byte address 0x4 - core index']
  #allocation1 [shape = 'u32[144,128]{1,0:T(1,128)}', space=vmem, size = 0x12000, scoped, tag = 'internal scratch']
  %s0 = inlined_call_operand.vmem [shape: f32[2,4,256], index: 0, kind: input, shape index: {}]
  %s1 = inlined_call_operand.vmem [shape: s32[2,1,256], index: 1, kind: input, shape index: {}]
  %s2 = inlined_call_operand.vmem [shape: f32[4,1], index: 2, kind: input, shape index: {}]
  %s3 = inlined_call_operand.vmem [shape: f32[2,1,256], index: 3, kind: output, shape index: {0}]
  %s4 = inlined_call_operand.vmem [shape: f32[2,1,256], index: 4, kind: output, shape index: {1}]
  %5 = xla_tuple %s3, %s4
  %s6 = sld [smem:[#allocation0]]
  $region53: #{weighted_fs_ohem_ce_loss.1} parent=0
    _
  %s8 = ssub.s32 1, %s6
  %s9 = scalar_select 0, %s8, %s6
  loop: start=0, step=1, limit=4
  $region2: #{weighted_fs_ohem_ce_loss.1} parent=0 // loop_pre_header
    _
  $region3: #{weighted_fs_ohem_ce_loss.1} parent=0 // loop_header
    %s11 = sphi 0, %s15
    %p12 = scmp.ge.s32.totalorder %s11, 4
    %s18 = sphi 0, %s30
    %s19 = sphi 0, %s26
    %s20 = sphi 0, %s18
    %s21 = sphi 0, %s19
    %s22 = sphi 0, %s20
    %s23 = sphi 0, %s21
    %s35 = sphi 0, %s37
    %s38 = sphi 0, %s35
    %s39 = sphi 0, %s38
    %s55 = sphi 0, %s39
    %s63 = sphi 0, %s65
    %s66 = sphi 0, %s63
    %s67 = sphi 0, %s66
    %s83 = sphi 0, %s67
    %s87 = sphi 0, %s87
    %s89 = sphi 0, %s87
    %s90 = sphi 0, %s89
    %s104 = sphi 0, %s90
    %s112 = sphi 0, %s114
    %s115 = sphi 0, %s112
    %s116 = sphi 0, %s115
    %s132 = sphi 0, %s116
    %s140 = sphi 0, %s142
    %s143 = sphi 0, %s140
    %s144 = sphi 0, %s143
    %s160 = sphi 0, %s144
  $region4: #{weighted_fs_ohem_ce_loss.1} parent=0 // loop_header_branch
    %14 = sbr.rel (%p12) target = $region8
  $region5: #{weighted_fs_ohem_ce_loss.1} parent=0 // loop_body
    %s16 = ssub.s32 %s11, 1
    %s17 = ssub.s32 %s11, 2
    %s24 = sadd.s32 1, %s19
    %p25 = scmp.ge.s32.totalorder %s24, 1
    %s26 = scalar_select %p25, 0, %s24
    %s27 = sadd.s32 1, %s18
    %s28 = scalar_select %p25, %s27, %s18
    %p29 = scmp.ge.s32.totalorder %s28, 2
    %s30 = scalar_select %p29, 0, %s28
    %s31 = ssub.s32 %s18, %s30
    %s32 = ssub.s32 %s19, %s26
    %s33 = sor.u32 %s31, %s32
    %p34 = scmp.eq.s32.totalorder %s33, 0
    %s36 = sadd.s32 %s35, 1
    %s37 = scalar_select %p34, %s35, %s36
    %p40 = pneg %p34
    %p41 = scmp.eq.s32.totalorder %s11, 1
    %p42 = por %p40, %p41
    %p43 = scmp.ne.s32.totalorder %s35, %s38
    %p44 = scmp.eq.s32.totalorder %s11, 0
    %p45 = por %p43, %p44
    %p46 = scmp.ne.s32.totalorder %s35, %s38
    %p47 = scmp.eq.s32.totalorder %s16, 1
    %p48 = por %p46, %p47
    %p49 = scmp.ne.s32.totalorder %s38, %s39
    %p50 = scmp.eq.s32.totalorder %s16, 0
    %p51 = por %p49, %p50
    %p52 = scmp.ne.s32.totalorder %s38, %s39
    %p53 = scmp.eq.s32.totalorder %s17, 1
    %p54 = por %p52, %p53
    %p56 = scmp.ne.s32.totalorder %s39, %s55
    %p57 = scmp.eq.s32.totalorder %s17, 0
    %p58 = por %p56, %p57
    %s59 = ssub.s32 %s18, %s30
    %s60 = ssub.s32 %s19, %s26
    %s61 = sor.u32 %s59, %s60
    %p62 = scmp.eq.s32.totalorder %s61, 0
    %s64 = sadd.s32 %s63, 1
    %s65 = scalar_select %p62, %s63, %s64
    %p68 = pneg %p62
    %p69 = scmp.eq.s32.totalorder %s11, 1
    %p70 = por %p68, %p69
    %p71 = scmp.ne.s32.totalorder %s63, %s66
    %p72 = scmp.eq.s32.totalorder %s11, 0
    %p73 = por %p71, %p72
    %p74 = scmp.ne.s32.totalorder %s63, %s66
    %p75 = scmp.eq.s32.totalorder %s16, 1
    %p76 = por %p74, %p75
    %p77 = scmp.ne.s32.totalorder %s66, %s67
    %p78 = scmp.eq.s32.totalorder %s16, 0
    %p79 = por %p77, %p78
    %p80 = scmp.ne.s32.totalorder %s66, %s67
    %p81 = scmp.eq.s32.totalorder %s17, 1
    %p82 = por %p80, %p81
    %p84 = scmp.ne.s32.totalorder %s67, %s83
    %p85 = scmp.eq.s32.totalorder %s17, 0
    %p86 = por %p84, %p85
    %s88 = sadd.s32 %s87, 1
    %p91 = scmp.eq.s32.totalorder %s11, 1
    %p92 = scmp.ne.s32.totalorder %s87, %s89
    %p93 = scmp.eq.s32.totalorder %s11, 0
    %p94 = por %p92, %p93
    %p95 = scmp.ne.s32.totalorder %s87, %s89
    %p96 = scmp.eq.s32.totalorder %s16, 1
    %p97 = por %p95, %p96
    %p98 = scmp.ne.s32.totalorder %s89, %s90
    %p99 = scmp.eq.s32.totalorder %s16, 0
    %p100 = por %p98, %p99
    %p101 = scmp.ne.s32.totalorder %s89, %s90
    %p102 = scmp.eq.s32.totalorder %s17, 1
    %p103 = por %p101, %p102
    %p105 = scmp.ne.s32.totalorder %s90, %s104
    %p106 = scmp.eq.s32.totalorder %s17, 0
    %p107 = por %p105, %p106
    %s108 = ssub.s32 %s18, %s30
    %s109 = ssub.s32 %s19, %s26
    %s110 = sor.u32 %s108, %s109
    %p111 = scmp.eq.s32.totalorder %s110, 0
    %s113 = sadd.s32 %s112, 1
    %s114 = scalar_select %p111, %s112, %s113
    %p117 = pneg %p111
    %p118 = scmp.eq.s32.totalorder %s11, 1
    %p119 = por %p117, %p118
    %p120 = scmp.ne.s32.totalorder %s112, %s115
    %p121 = scmp.eq.s32.totalorder %s11, 0
    %p122 = por %p120, %p121
    %p123 = scmp.ne.s32.totalorder %s112, %s115
    %p124 = scmp.eq.s32.totalorder %s16, 1
    %p125 = por %p123, %p124
    %p126 = scmp.ne.s32.totalorder %s115, %s116
    %p127 = scmp.eq.s32.totalorder %s16, 0
    %p128 = por %p126, %p127
    %p129 = scmp.ne.s32.totalorder %s115, %s116
    %p130 = scmp.eq.s32.totalorder %s17, 1
    %p131 = por %p129, %p130
    %p133 = scmp.ne.s32.totalorder %s116, %s132
    %p134 = scmp.eq.s32.totalorder %s17, 0
    %p135 = por %p133, %p134
    %s136 = ssub.s32 %s18, %s30
    %s137 = ssub.s32 %s19, %s26
    %s138 = sor.u32 %s136, %s137
    %p139 = scmp.eq.s32.totalorder %s138, 0
    %s141 = sadd.s32 %s140, 1
    %s142 = scalar_select %p139, %s140, %s141
    %p145 = pneg %p139
    %p146 = scmp.eq.s32.totalorder %s11, 1
    %p147 = por %p145, %p146
    %p148 = scmp.ne.s32.totalorder %s140, %s143
    %p149 = scmp.eq.s32.totalorder %s11, 0
    %p150 = por %p148, %p149
    %p151 = scmp.ne.s32.totalorder %s140, %s143
    %p152 = scmp.eq.s32.totalorder %s16, 1
    %p153 = por %p151, %p152
    %p154 = scmp.ne.s32.totalorder %s143, %s144
    %p155 = scmp.eq.s32.totalorder %s16, 0
    %p156 = por %p154, %p155
    %p157 = scmp.ne.s32.totalorder %s143, %s144
    %p158 = scmp.eq.s32.totalorder %s17, 1
    %p159 = por %p157, %p158
    %p161 = scmp.ne.s32.totalorder %s144, %s160
    %p162 = scmp.eq.s32.totalorder %s17, 0
    %p163 = por %p161, %p162
    %p164 = scmp.le.s32.totalorder 1, %s11
    %p165 = scmp.lt.s32.totalorder %s11, 3
    %p166 = pnand %p164, %p165
    %p167 = pneg %p166
    // Predicated region
    $region9: #{weighted_fs_ohem_ce_loss.1} parent=5 // pred_check
      _
    $region10: #{weighted_fs_ohem_ce_loss.1} parent=5 // pred_check_branch
      %169 = sbr.rel (%p166) target = $region12
    $region11: #{weighted_fs_ohem_ce_loss.1} parent=5 // pred_region
      %s170 = ssub.s32 %s11, 1
      // Predicated region
      $region13: #{weighted_fs_ohem_ce_loss.1} parent=11 // pred_check
        %p171 = pneg %p100
      $region14: #{weighted_fs_ohem_ce_loss.1} parent=11 // pred_check_branch
        %173 = sbr.rel (%p171) target = $region16
      $region15: #{weighted_fs_ohem_ce_loss.1} parent=11 // pred_region
        _
      $region16: #{weighted_fs_ohem_ce_loss.1} parent=11 // pred_fallthru
        _
    $region12: #{weighted_fs_ohem_ce_loss.1} parent=5 // pred_fallthru
      _
    %p174 = scmp.lt.s32.totalorder %s11, 2
    // Predicated region
    $region17: #{weighted_fs_ohem_ce_loss.1} parent=5 // pred_check
      %p175 = pneg %p174
    $region18: #{weighted_fs_ohem_ce_loss.1} parent=5 // pred_check_branch
      %177 = sbr.rel (%p175) target = $region20
    $region19: #{weighted_fs_ohem_ce_loss.1} parent=5 // pred_region
      // Predicated region
      $region21: #{weighted_fs_ohem_ce_loss.1} parent=19 // pred_check
        %p178 = pneg %p45
      $region22: #{weighted_fs_ohem_ce_loss.1} parent=19 // pred_check_branch
        %180 = sbr.rel (%p178) target = $region24
      $region23: #{weighted_fs_ohem_ce_loss.1} parent=19 // pred_region
        %s181 = smul.u32 2, %s19
        %p182 = scmp.lt.s32.totalorder %s18, 1
        %s183 = scalar_select %p182, %s18, 1
        %p184 = scmp.lt.s32.totalorder %s181, 1
        %s185 = scalar_select %p184, %s181, 1
        %s186 = smul.addr %s183, 2
        %s187 = sadd.s32 %s185, %s186
        %s188 = smul.addr %s187, 4
        %s189 = scalar_lea.vmem %s0, %s188
        %s190 = smul.u32 2, %s19
      $region24: #{weighted_fs_ohem_ce_loss.1} parent=19 // pred_fallthru
        _
      // Predicated region
      $region25: #{weighted_fs_ohem_ce_loss.1} parent=19 // pred_check
        %p191 = pneg %p73
      $region26: #{weighted_fs_ohem_ce_loss.1} parent=19 // pred_check_branch
        %193 = sbr.rel (%p191) target = $region28
      $region27: #{weighted_fs_ohem_ce_loss.1} parent=19 // pred_region
        %s194 = smul.u32 2, %s19
        %p195 = scmp.lt.s32.totalorder %s18, 1
        %s196 = scalar_select %p195, %s18, 1
        %p197 = scmp.lt.s32.totalorder %s194, 1
        %s198 = scalar_select %p197, %s194, 1
        %s199 = smul.addr %s196, 2
        %s200 = sadd.s32 %s198, %s199
        %s201 = scalar_lea.vmem %s1, %s200
        %s202 = smul.u32 2, %s19
      $region28: #{weighted_fs_ohem_ce_loss.1} parent=19 // pred_fallthru
        _
    $region20: #{weighted_fs_ohem_ce_loss.1} parent=5 // pred_fallthru
      _
    %p203 = scmp.le.s32.totalorder 1, %s11
    %p204 = scmp.lt.s32.totalorder %s11, 3
    %p205 = pnand %p203, %p204
    %p206 = pneg %p205
    // Predicated region
    $region29: #{weighted_fs_ohem_ce_loss.1} parent=5 // pred_check
      _
    $region30: #{weighted_fs_ohem_ce_loss.1} parent=5 // pred_check_branch
      %208 = sbr.rel (%p205) target = $region32
    $region31: #{weighted_fs_ohem_ce_loss.1} parent=5 // pred_region
      %s209 = ssub.s32 %s11, 1
      %s210 = smul.u32 2, %s21
      %p211 = scmp.lt.s32.totalorder %s20, 1
      %s212 = scalar_select %p211, %s20, 1
      %p213 = scmp.lt.s32.totalorder %s210, 1
      %s214 = scalar_select %p213, %s210, 1
      %s215 = smul.addr %s212, 2
      %s216 = sadd.s32 %s214, %s215
      %s217 = smul.addr %s216, 4
      %s218 = scalar_lea.vmem %s0, %s217
      %p219 = pneg %p51
      %p220 = pneg %p48
      %s221 = smul.u32 2, %s21
      %p222 = scmp.lt.s32.totalorder %s20, 1
      %s223 = scalar_select %p222, %s20, 1
      %p224 = scmp.lt.s32.totalorder %s221, 1
      %s225 = scalar_select %p224, %s221, 1
      %s226 = smul.addr %s223, 2
      %s227 = sadd.s32 %s225, %s226
      %s228 = scalar_lea.vmem %s1, %s227
      %p229 = pneg %p79
      %p230 = pneg %p76
      %p231 = pneg %p100
      %p232 = pneg %p97
      %p233 = pneg %p128
      %p234 = pneg %p125
      %s235 = smul.u32 2, %s21
      %p236 = scmp.lt.s32.totalorder %s20, 1
      %s237 = scalar_select %p236, %s20, 1
      %p238 = scmp.lt.s32.totalorder %s235, 1
      %s239 = scalar_select %p238, %s235, 1
      %s240 = smul.addr %s237, 2
      %s241 = sadd.s32 %s239, %s240
      %s242 = scalar_lea.vmem %s3, %s241
      %p243 = pneg %p156
      %p244 = pneg %p153
      %s245 = smul.u32 2, %s21
      %p246 = scmp.lt.s32.totalorder %s20, 1
      %s247 = scalar_select %p246, %s20, 1
      %p248 = scmp.lt.s32.totalorder %s245, 1
      %s249 = scalar_select %p248, %s245, 1
      %s250 = smul.addr %s247, 2
      %s251 = sadd.s32 %s249, %s250
      %s252 = scalar_lea.vmem %s4, %s251
      %s253 = smul.u32 2, %s21
      %p254 = scmp.lt.s32.totalorder %s20, 1
      %s255 = scalar_select %p254, %s20, 1
      %p256 = scmp.lt.s32.totalorder %s253, 1
      %s257 = scalar_select %p256, %s253, 1
      %s258 = smul.addr %s255, 2
      %s259 = sadd.s32 %s257, %s258
      %s260 = smul.addr %s259, 4
      %s261 = scalar_lea.vmem %s0, %s260
      %s262 = smul.u32 2, %s21
      %s263 = smul.u32 2, %s21
      %p264 = scmp.lt.s32.totalorder %s20, 1
      %s265 = scalar_select %p264, %s20, 1
      %p266 = scmp.lt.s32.totalorder %s263, 1
      %s267 = scalar_select %p266, %s263, 1
      %s268 = smul.addr %s265, 2
      %s269 = sadd.s32 %s267, %s268
      %s270 = scalar_lea.vmem %s1, %s269
      %s271 = smul.u32 2, %s21
      %s272 = smul.u32 2, %s21
      %p273 = scmp.lt.s32.totalorder %s20, 1
      %s274 = scalar_select %p273, %s20, 1
      %p275 = scmp.lt.s32.totalorder %s272, 1
      %s276 = scalar_select %p275, %s272, 1
      %s277 = smul.addr %s274, 2
      %s278 = sadd.s32 %s276, %s277
      %s279 = scalar_lea.vmem %s3, %s278
      %s280 = smul.u32 2, %s21
      %s281 = smul.u32 2, %s21
      %p282 = scmp.lt.s32.totalorder %s20, 1
      %s283 = scalar_select %p282, %s20, 1
      %p284 = scmp.lt.s32.totalorder %s281, 1
      %s285 = scalar_select %p284, %s281, 1
      %s286 = smul.addr %s283, 2
      %s287 = sadd.s32 %s285, %s286
      %s288 = scalar_lea.vmem %s4, %s287
      %s289 = smul.u32 2, %s21
      %v290 = vld [vmem:[%s261] sm:$0xff]
      %v291 = vld [vmem:[%s270] sm:$0x3]
      %v292 = vld [vmem:[%s2] sm:$0xf]
      %vm293 = vcmp.ne.s32.totalorder %v291, 4294967295
      %v294 = vsel %vm293, %v291, 0
      %v296 = vcombine.high %v290, %v290
      %vm298 = vcmask 1043456
      %v299 = vsel %vm298, %v290, -inf
      %v300 = vrot.slane %v299, 4
      %v301 = vmax.f32 %v299, %v300
      %v302 = vrot.slane %v301, 2
      %v303 = vmax.f32 %v301, %v302
      %v304 = vrot.slane %v303, 1
      %v305 = vmax.f32 %v303, %v304
      %v306 = vsel %vm298, %v296, -inf
      %v307 = vrot.slane %v306, 4
      %v308 = vmax.f32 %v306, %v307
      %v309 = vrot.slane %v308, 2
      %v310 = vmax.f32 %v308, %v309
      %v311 = vrot.slane %v310, 1
      %v312 = vmax.f32 %v310, %v311
      %v315 = vcombine.low %v305, %v312
      %v317 = vsub.f32 %v290, %v315
      %v318 = vmul.f32 %v317, 1.442695
      %v319 = vpow.pop %v318
      %v321 = vcombine.high %v319, %v319
      %v323 = vsel %vm298, %v319, 0.0
      %v324 = vrot.slane %v323, 4
      %v325 = vadd.f32 %v323, %v324
      %v326 = vrot.slane %v325, 2
      %v327 = vadd.f32 %v325, %v326
      %v328 = vrot.slane %v327, 1
      %v329 = vadd.f32 %v327, %v328
      %v330 = vsel %vm298, %v321, 0.0
      %v331 = vrot.slane %v330, 4
      %v332 = vadd.f32 %v330, %v331
      %v333 = vrot.slane %v332, 2
      %v334 = vadd.f32 %v332, %v333
      %v335 = vrot.slane %v334, 1
      %v336 = vadd.f32 %v334, %v335
      %v337 = vlog2.pop %v329
      %v338 = vmul.f32 %v337, 0.6931472
      %v339 = vlog2.pop %v336
      %v340 = vmul.f32 %v339, 0.6931472
      %v341 = vadd.f32 %v305, %v338
      %v342 = vadd.f32 %v312, %v340
      %v343 = vlaneseq
      %v344 = vshrl.u32 %v343, 7
      %v345 = vlaneseq
      %v346 = vshrl.u32 %v345, 7
      %v347 = vsub.s32 0, %v346
      %v348 = vrot.slane %v294, %v347
      %v349 = vlaneseq
      %v350 = vshrl.u32 %v349, 7
      %v351 = vsub.s32 1, %v350
      %v352 = vrot.slane %v294, %v351
      %vm353 = vcmp.eq.s32.totalorder %v344, %v348
      %vm354 = vcmp.eq.s32.totalorder %v344, %v352
      %v355 = vsel %vm353, %v290, 0.0
      %v356 = vsel %vm354, %v296, 0.0
      %v357 = vsel %vm298, %v355, 0.0
      %v358 = vrot.slane %v357, 4
      %v359 = vadd.f32 %v357, %v358
      %v360 = vrot.slane %v359, 2
      %v361 = vadd.f32 %v359, %v360
      %v362 = vrot.slane %v361, 1
      %v363 = vadd.f32 %v361, %v362
      %v364 = vsel %vm298, %v356, 0.0
      %v365 = vrot.slane %v364, 4
      %v366 = vadd.f32 %v364, %v365
      %v367 = vrot.slane %v366, 2
      %v368 = vadd.f32 %v366, %v367
      %v369 = vrot.slane %v368, 1
      %v370 = vadd.f32 %v368, %v369
      %372 = vset.pattern.permute.xlu0 0
      %373 = vperm.xlu0 %372, %v292
      %v374 = vpop.permute.xlu0 %373
      %v376 = vsel %vm353, %v374, 0.0
      %v377 = vsel %vm354, %v374, 0.0
      %v378 = vsel %vm298, %v376, 0.0
      %v379 = vrot.slane %v378, 4
      %v380 = vadd.f32 %v378, %v379
      %v381 = vrot.slane %v380, 2
      %v382 = vadd.f32 %v380, %v381
      %v383 = vrot.slane %v382, 1
      %v384 = vadd.f32 %v382, %v383
      %v385 = vsel %vm298, %v377, 0.0
      %v386 = vrot.slane %v385, 4
      %v387 = vadd.f32 %v385, %v386
      %v388 = vrot.slane %v387, 2
      %v389 = vadd.f32 %v387, %v388
      %v390 = vrot.slane %v389, 1
      %v391 = vadd.f32 %v389, %v390
      %v392 = vsub.f32 %v341, %v363
      %v393 = vsub.f32 %v342, %v370
      %v394 = vmul.f32 %v392, %v384
      %v395 = vmul.f32 %v393, %v391
      %v396 = vsub.f32 %v363, %v341
      %v397 = vsub.f32 %v370, %v342
      %v398 = vmul.f32 %v396, 1.442695
      %v399 = vpow.pop %v398
      %v400 = vmul.f32 %v397, 1.442695
      %v401 = vpow.pop %v400
      %v404 = vcombine.low %v399, %v401
      %v406 = vunpack.c.l.s4 1966171168
      %v407 = vunpack.c.0.s8 %v406
      %v408 = vlaneseq
      %v409 = vshrl.u32 %v408, 7
      %v410 = vsub.s32 %v407, %v409
      %v411 = vrot.slane %v404, %v410
      %v413 = vunpack.c.l.s4 1966171168
      %v414 = vunpack.c.0.s8 %v413
      %v415 = vlaneseq
      %v416 = vshrl.u32 %v415, 7
      %v417 = vsub.s32 %v414, %v416
      %v418 = vrot.slane %v411, %v417
      %v420 = vsel %vm293, %v418, inf
      %v421 = vlaneseq
      %vm422 = vcmp.ge.s32.totalorder %v421, 0
      %vm423 = vcmp.lt.s32.totalorder %v421, 256
      %vm424 = vmand %vm422, %vm423
      %425 = vst.msk [vmem:[%s279] sm:$0x3] %vm424, %v420
      %v428 = vcombine.low %v394, %v395
      %v430 = vunpack.c.l.s4 1966171168
      %v431 = vunpack.c.0.s8 %v430
      %v432 = vlaneseq
      %v433 = vshrl.u32 %v432, 7
      %v434 = vsub.s32 %v431, %v433
      %v435 = vrot.slane %v428, %v434
      %v437 = vunpack.c.l.s4 1966171168
      %v438 = vunpack.c.0.s8 %v437
      %v439 = vlaneseq
      %v440 = vshrl.u32 %v439, 7
      %v441 = vsub.s32 %v438, %v440
      %v442 = vrot.slane %v435, %v441
      %v444 = vsel %vm293, %v442, 0.0
      %445 = vst.msk [vmem:[%s288] sm:$0x3] %vm424, %v444
      %s446 = smul.u32 2, %s21
      %p447 = scmp.lt.s32.totalorder %s20, 1
      %s448 = scalar_select %p447, %s20, 1
      %p449 = scmp.lt.s32.totalorder %s446, 1
      %s450 = scalar_select %p449, %s446, 1
      %s451 = smul.addr %s448, 2
      %s452 = sadd.s32 %s450, %s451
      %s453 = scalar_lea.vmem %s3, %s452
      %s454 = smul.u32 2, %s21
      %p455 = scmp.lt.s32.totalorder %s20, 1
      %s456 = scalar_select %p455, %s20, 1
      %p457 = scmp.lt.s32.totalorder %s454, 1
      %s458 = scalar_select %p457, %s454, 1
      %s459 = smul.addr %s456, 2
      %s460 = sadd.s32 %s458, %s459
      %s461 = scalar_lea.vmem %s4, %s460
      // Predicated region
      $region33: #{weighted_fs_ohem_ce_loss.1} parent=31 // pred_check
        %p462 = pneg %p125
      $region34: #{weighted_fs_ohem_ce_loss.1} parent=31 // pred_check_branch
        %464 = sbr.rel (%p462) target = $region36
      $region35: #{weighted_fs_ohem_ce_loss.1} parent=31 // pred_region
        %s465 = smul.u32 2, %s21
      $region36: #{weighted_fs_ohem_ce_loss.1} parent=31 // pred_fallthru
        _
      // Predicated region
      $region37: #{weighted_fs_ohem_ce_loss.1} parent=31 // pred_check
        %p466 = pneg %p153
      $region38: #{weighted_fs_ohem_ce_loss.1} parent=31 // pred_check_branch
        %468 = sbr.rel (%p466) target = $region40
      $region39: #{weighted_fs_ohem_ce_loss.1} parent=31 // pred_region
        %s469 = smul.u32 2, %s21
      $region40: #{weighted_fs_ohem_ce_loss.1} parent=31 // pred_fallthru
        _
    $region32: #{weighted_fs_ohem_ce_loss.1} parent=5 // pred_fallthru
      _
    %p470 = scmp.le.s32.totalorder 2, %s11
    // Predicated region
    $region41: #{weighted_fs_ohem_ce_loss.1} parent=5 // pred_check
      %p471 = pneg %p470
    $region42: #{weighted_fs_ohem_ce_loss.1} parent=5 // pred_check_branch
      %473 = sbr.rel (%p471) target = $region44
    $region43: #{weighted_fs_ohem_ce_loss.1} parent=5 // pred_region
      %s474 = ssub.s32 %s11, 2
      // Predicated region
      $region45: #{weighted_fs_ohem_ce_loss.1} parent=43 // pred_check
        %p475 = pneg %p131
      $region46: #{weighted_fs_ohem_ce_loss.1} parent=43 // pred_check_branch
        %477 = sbr.rel (%p475) target = $region48
      $region47: #{weighted_fs_ohem_ce_loss.1} parent=43 // pred_region
        %s478 = smul.u32 2, %s23
        %p479 = scmp.lt.s32.totalorder %s22, 1
        %s480 = scalar_select %p479, %s22, 1
        %p481 = scmp.lt.s32.totalorder %s478, 1
        %s482 = scalar_select %p481, %s478, 1
        %s483 = smul.addr %s480, 2
        %s484 = sadd.s32 %s482, %s483
        %s485 = scalar_lea.vmem %s3, %s484
      $region48: #{weighted_fs_ohem_ce_loss.1} parent=43 // pred_fallthru
        _
      // Predicated region
      $region49: #{weighted_fs_ohem_ce_loss.1} parent=43 // pred_check
        %p486 = pneg %p159
      $region50: #{weighted_fs_ohem_ce_loss.1} parent=43 // pred_check_branch
        %488 = sbr.rel (%p486) target = $region52
      $region51: #{weighted_fs_ohem_ce_loss.1} parent=43 // pred_region
        %s489 = smul.u32 2, %s23
        %p490 = scmp.lt.s32.totalorder %s22, 1
        %s491 = scalar_select %p490, %s22, 1
        %p492 = scmp.lt.s32.totalorder %s489, 1
        %s493 = scalar_select %p492, %s489, 1
        %s494 = smul.addr %s491, 2
        %s495 = sadd.s32 %s493, %s494
        %s496 = scalar_lea.vmem %s4, %s495
      $region52: #{weighted_fs_ohem_ce_loss.1} parent=43 // pred_fallthru
        _
    $region44: #{weighted_fs_ohem_ce_loss.1} parent=5 // pred_fallthru
      _
  $region6: #{weighted_fs_ohem_ce_loss.1} parent=0 // loop_footer
    %s15 = sadd.s32 1, %s11
  $region7: #{weighted_fs_ohem_ce_loss.1} parent=0 // loop_footer_branch
    %10 = sbr.rel target = $region3
  $region8: #{weighted_fs_ohem_ce_loss.1} parent=0 // loop_exit
    _

</llo_original>
